<compile_context>
chip_gen: v7x
topology: tpu7x:2x2x1
jax: 0.10.0
libtpu: 0.0.40
codegen_flags: <defaults>
</compile_context>

<pallas_src>
import functools

import jax
import jax.numpy as jnp
from jax.experimental import pallas as pl
from jax.experimental.pallas import tpu as pltpu


def _round_up(a: int, b: int) -> int:
    return (a + b - 1) // b * b


# --------------------------------------------------------------------------
# Kernels
# --------------------------------------------------------------------------

def _pe_kernel_single(x_ref, w_ref, b_ref, o_ref):
    """Full K in one tile: one GEMM per row tile, bias fused, no scratch."""
    acc = jnp.dot(x_ref[...], w_ref[...], preferred_element_type=jnp.float32)
    o_ref[...] = (acc + b_ref[...]).astype(o_ref.dtype)


def _pe_kernel_multi(x_ref, w_ref, b_ref, o_ref):
    """K tiled on the trailing 'arbitrary' axis; f32 o_ref is the accumulator."""
    k = pl.program_id(1)

    @pl.when(k == 0)
    def _():
        o_ref[...] = jnp.zeros_like(o_ref)

    o_ref[...] += jnp.dot(x_ref[...], w_ref[...],
                          preferred_element_type=jnp.float32)

    @pl.when(k == pl.num_programs(1) - 1)
    def _():
        o_ref[...] += b_ref[...]


# --------------------------------------------------------------------------
# Tiling / VMEM heuristics
# --------------------------------------------------------------------------

def _vmem_config():
    """Return (tile budget bytes, vmem_limit_bytes) for this chip generation."""
    phys = None
    try:
        info = pltpu.get_tpu_info()
        phys = getattr(info, "vmem_capacity_bytes", None)
    except Exception:  # pragma: no cover - conservative fallback
        phys = None
    if phys is None:
        phys = 64 * 1024 * 1024
    if phys >= 128 * 1024 * 1024:          # v5e / v6e: 128 MiB physical
        return 48 * 1024 * 1024, 96 * 1024 * 1024
    return 24 * 1024 * 1024, 48 * 1024 * 1024   # v7x: 64 MiB per TensorCore


def _pick_tiles(M: int, K_pad: int, E_pad: int, budget_bytes: int,
                in_itemsize: int):
    """Pick (tm, tk). Prefer tk == K_pad (collapse the reduction grid axis)."""

    def fits(tm, tk):
        x_b = 2 * tm * tk * in_itemsize        # double-buffered activations
        w_b = 2 * tk * E_pad * in_itemsize     # weight (conservatively x2)
        o_b = 2 * tm * E_pad * 4               # f32 output / accumulator
        b_b = 2 * E_pad * 4
        return x_b + w_b + o_b + b_b <= budget_bytes

    M8 = _round_up(M, 8)
    # Keep >= 2 row tiles whenever M allows so both v7x TensorCores get work.
    tm_cap = M8 if M8 <= 8 else min(_round_up((M + 1) // 2, 8), 512)
    tm_cands = [t for t in (512, 256, 128, 64, 32, 16, 8) if t <= tm_cap]
    if not tm_cands:
        tm_cands = [tm_cap]

    # 1) Try to keep the full K resident (weight fetched once, no K loop),
    #    with the largest row tile that still fits.
    for tm in tm_cands:
        if fits(tm, K_pad):
            return tm, K_pad

    # 2) K must be tiled: keep tm as large as possible (minimizes weight
    #    re-fetches across row tiles), then the largest tk that fits.
    for tm in tm_cands:
        tk = min(K_pad, 8192)
        while tk > 128 and not fits(tm, tk):
            tk -= 128
        if fits(tm, tk):
            return tm, tk
    return tm_cands[-1], 128


# --------------------------------------------------------------------------
# Wrapper
# --------------------------------------------------------------------------

@functools.partial(jax.jit, static_argnames=("patch_size", "compute_dtype"))
def patch_embedding(x, weight, bias, *, patch_size, compute_dtype="bfloat16"):
    """Pallas implementation of PatchEmbedding.forward.

    x:      (B, C, H, W)  NCHW, like PyTorch
    weight: (E, C, P, P)  Conv2d weight
    bias:   (E,)          Conv2d bias
    compute_dtype: dtype for the GEMM inputs (accumulation is always float32).
                   Default bfloat16; pass "float32"/None for bit-parity.
    returns (B, num_patches, E) in x.dtype
    """
    B, C, H, W = x.shape
    E = weight.shape[0]
    P = patch_size
    nh, nw = H // P, W // P
    N = nh * nw

    M = B * N                    # rows (patches)
    K = C * P * P                # contraction (flattened patch)
    E_pad = _round_up(E, 128)    # lane-dense output columns
    K_pad = _round_up(K, 128)

    cdtype = x.dtype if compute_dtype is None else jnp.dtype(compute_dtype)
    budget_bytes, vmem_limit = _vmem_config()
    tm, tk = _pick_tiles(M, K_pad, E_pad, budget_bytes, jnp.dtype(cdtype).itemsize)
    M_pad = _round_up(M, tm)
    K_pad = _round_up(K, tk) if tk != K_pad else K_pad

    # Patchify: (B, C, nh, P, nw, P) -> (B, nh, nw, C, P, P) -> (M, K); pad to
    # the tile grid (zero pads contribute 0 to the dot, sliced off below).
    x_rows = x.reshape(B, C, nh, P, nw, P).transpose(0, 2, 4, 1, 3, 5)
    x_rows = x_rows.reshape(M, K)
    x_rows = jnp.pad(x_rows, ((0, M_pad - M), (0, K_pad - K))).astype(cdtype)

    # Weight transposed ONCE to (K_pad, E_pad): canonical (tm,tk)x(tk,E) GEMM,
    # no in-kernel weight-tile transposes.
    w2d = jnp.transpose(weight.reshape(E, K))
    w2d = jnp.pad(w2d, ((0, K_pad - K), (0, E_pad - E))).astype(cdtype)

    b_row = jnp.pad(bias.astype(jnp.float32), (0, E_pad - E)).reshape(1, E_pad)

    single_k = (K_pad == tk)

    if single_k:
        grid = (M_pad // tm,)
        out = pl.pallas_call(
            _pe_kernel_single,
            out_shape=jax.ShapeDtypeStruct((M_pad, E_pad), x.dtype),
            grid_spec=pltpu.PrefetchScalarGridSpec(
                num_scalar_prefetch=0,
                grid=grid,
                in_specs=[
                    pl.BlockSpec((tm, K_pad), lambda i: (i, 0)),     # patches
                    pl.BlockSpec((K_pad, E_pad), lambda i: (0, 0)),  # weight (resident)
                    pl.BlockSpec((1, E_pad), lambda i: (0, 0)),      # bias
                ],
                out_specs=pl.BlockSpec((tm, E_pad), lambda i: (i, 0)),
            ),
            compiler_params=pltpu.CompilerParams(
                dimension_semantics=("parallel",),
                vmem_limit_bytes=vmem_limit,
                allow_input_fusion=[True, True, True],
            ),
        )(x_rows, w2d, b_row)
    else:
        grid = (M_pad // tm, K_pad // tk)
        out = pl.pallas_call(
            _pe_kernel_multi,
            out_shape=jax.ShapeDtypeStruct((M_pad, E_pad), jnp.float32),
            grid_spec=pltpu.PrefetchScalarGridSpec(
                num_scalar_prefetch=0,
                grid=grid,
                in_specs=[
                    pl.BlockSpec((tm, tk), lambda i, k: (i, k)),     # patches
                    pl.BlockSpec((tk, E_pad), lambda i, k: (k, 0)),  # weight
                    pl.BlockSpec((1, E_pad), lambda i, k: (0, 0)),   # bias
                ],
                out_specs=pl.BlockSpec((tm, E_pad), lambda i, k: (i, 0)),
            ),
            compiler_params=pltpu.CompilerParams(
                dimension_semantics=("parallel", "arbitrary"),
                vmem_limit_bytes=vmem_limit,
                allow_input_fusion=[True, True, True],
            ),
        )(x_rows, w2d, b_row)

    out = out[:M, :E]
    if out.dtype != x.dtype:
        out = out.astype(x.dtype)
    return out.reshape(B, N, E)


# --------------------------------------------------------------------------
# Demo / self-check
# --------------------------------------------------------------------------

if __name__ == "__main__":
    # Small shapes consistent with the module: img 16x32, patch 8,
    # in_channels 4, emb_size 32 -> num_patches = 2*4 = 8.
    B, C, H, W = 2, 4, 16, 32
    P = 8
    E = 32

    key = jax.random.PRNGKey(0)
    kx, kw, kb = jax.random.split(key, 3)
    x = jax.random.normal(kx, (B, C, H, W), dtype=jnp.float32)
    weight = jax.random.normal(kw, (E, C, P, P), dtype=jnp.float32) * 0.02
    bias = jax.random.normal(kb, (E,), dtype=jnp.float32) * 0.02

    # Reference: strided conv via einsum over patches (same semantics as
    # nn.Conv2d(kernel=P, stride=P) + Flatten(2) + transpose(1, 2)).
    nh, nw = H // P, W // P
    x_p = x.reshape(B, C, nh, P, nw, P).transpose(0, 2, 4, 1, 3, 5)
    ref = jnp.einsum("bhwcij,ecij->bhwe", x_p, weight) + bias
    ref = ref.reshape(B, nh * nw, E)

    # Default fast path: bf16 GEMM inputs, f32 accumulation.
    out = jax.block_until_ready(patch_embedding(x, weight, bias, patch_size=P))
    assert out.shape == (B, nh * nw, E), out.shape
    assert jnp.allclose(out, ref, atol=3e-2, rtol=3e-2), float(
        jnp.max(jnp.abs(out - ref)))

    # Bit-parity path: f32 compute.
    out32 = jax.block_until_ready(
        patch_embedding(x, weight, bias, patch_size=P, compute_dtype="float32"))
    assert jnp.allclose(out32, ref, atol=1e-4, rtol=1e-4), float(
        jnp.max(jnp.abs(out32 - ref)))

    print("KERNEL_OK")
</pallas_src>

<mosaic_0001>
module attributes {stable_mosaic.version = 11 : i64} {
  func.func @_pe_kernel_single(%arg0: i32, %arg1: memref<8x256xbf16, #tpu.memory_space<vmem>>, %arg2: memref<256x128xbf16, #tpu.memory_space<vmem>>, %arg3: memref<1x128xf32, #tpu.memory_space<vmem>>, %arg4: memref<8x128xf32, #tpu.memory_space<vmem>>) attributes {dimension_semantics = [#tpu.dimension_semantics<parallel>], iteration_bounds = array<i64: 2>, scalar_prefetch = 0 : i64, scratch_operands = 0 : i64, tpu.core_type = #tpu.core_type<tc>, window_params = [{transform_indices = @transform_0, window_bounds = array<i64: 8, 256>}, {pipeline_mode = #tpu.pipeline_mode<synchronous>, transform_indices = @transform_1, window_bounds = array<i64: 256, 128>}, {pipeline_mode = #tpu.pipeline_mode<synchronous>, transform_indices = @transform_2, window_bounds = array<i64: 1, 128>}, {transform_indices = @transform_3, window_bounds = array<i64: 8, 128>}]} {
    %c0 = arith.constant 0 : index
    %c0_0 = arith.constant 0 : index
    %0 = vector.load %arg1[%c0, %c0_0] : memref<8x256xbf16, #tpu.memory_space<vmem>>, vector<8x256xbf16>
    %c0_1 = arith.constant 0 : index
    %c0_2 = arith.constant 0 : index
    %1 = vector.load %arg2[%c0_1, %c0_2] : memref<256x128xbf16, #tpu.memory_space<vmem>>, vector<256x128xbf16>
    %cst = arith.constant dense<0.000000e+00> : vector<8x128xf32>
    %2 = tpu.matmul %0, %1, %cst {dimension_numbers = #tpu.dot_dimension_numbers<[1], [0], [0], [1], [0, 0, 1, 1], [], []>} : vector<8x256xbf16>, vector<256x128xbf16>, vector<8x128xf32> -> vector<8x128xf32>
    %c0_3 = arith.constant 0 : index
    %c0_4 = arith.constant 0 : index
    %3 = vector.load %arg3[%c0_3, %c0_4] : memref<1x128xf32, #tpu.memory_space<vmem>>, vector<1x128xf32>
    %4 = vector.broadcast %3 : vector<1x128xf32> to vector<8x128xf32>
    %5 = arith.addf %2, %4 : vector<8x128xf32>
    %c0_5 = arith.constant 0 : index
    %c0_6 = arith.constant 0 : index
    %6 = vector.load %arg4[%c0_5, %c0_6] : memref<8x128xf32, #tpu.memory_space<vmem>>, vector<8x128xf32>
    tpu.vector_store %arg4[%c0_5, %c0_6], %5 {strides = array<i32>} : memref<8x128xf32, #tpu.memory_space<vmem>>, vector<8x128xf32>,
    return
  }
  func.func @transform_0(%arg0: i32) -> (i32, i32) {
    %c0_i32 = arith.constant 0 : i32
    %c0_i32_0 = arith.constant 0 : i32
    return %arg0, %c0_i32 : i32, i32
  }
  func.func @transform_1(%arg0: i32) -> (i32, i32) {
    %c0_i32 = arith.constant 0 : i32
    %c0_i32_0 = arith.constant 0 : i32
    %c0_i32_1 = arith.constant 0 : i32
    return %c0_i32, %c0_i32_0 : i32, i32
  }
  func.func @transform_2(%arg0: i32) -> (i32, i32) {
    %c0_i32 = arith.constant 0 : i32
    %c0_i32_0 = arith.constant 0 : i32
    %c0_i32_1 = arith.constant 0 : i32
    return %c0_i32, %c0_i32_0 : i32, i32
  }
  func.func @transform_3(%arg0: i32) -> (i32, i32) {
    %c0_i32 = arith.constant 0 : i32
    %c0_i32_0 = arith.constant 0 : i32
    return %arg0, %c0_i32 : i32, i32
  }
}

</mosaic_0001>

<llo_original>
// kernel: patch_embedding.2
$region0: #{patch_embedding.2}
  #allocation0 [shape = 'u32[]', space=smem, size = 0x4, offset = 0x4, fixed_abs, tag = 'smem constant byte address 0x4 - core index']
  #allocation1 [shape = 'u32[144,128]{1,0:T(1,128)}', space=vmem, size = 0x12000, scoped, tag = 'internal scratch']
  #allocation2 [shape = 'u32[2048]{0}', space=vmem, size = 0x2000, scoped, tag = 'scoped memory for patch_embedding.2']
  #allocation3 [shape = 'u32[2048]{0}', space=vmem, size = 0x2000, scoped, tag = 'scoped memory for patch_embedding.2']
  #allocation4 [shape = 'u32[2048]{0}', space=vmem, size = 0x2000, scoped, tag = 'scoped memory for patch_embedding.2']
  #allocation5 [shape = 'u32[2048]{0}', space=vmem, size = 0x2000, scoped, tag = 'scoped memory for patch_embedding.2']
  #allocation6 [shape = 'u32[2048]{0}', space=vmem, size = 0x2000, scoped, tag = 'scoped memory for patch_embedding.2']
  #allocation7 [shape = 'u32[2048]{0}', space=vmem, size = 0x2000, scoped, tag = 'scoped memory for patch_embedding.2']
  #allocation8 [shape = 'u32[2048]{0}', space=vmem, size = 0x2000, scoped, tag = 'scoped memory for patch_embedding.2']
  #allocation9 [shape = 'u32[2048]{0}', space=vmem, size = 0x2000, scoped, tag = 'scoped memory for patch_embedding.2']
  #allocation10 [shape = 'u32[2048]{0}', space=vmem, size = 0x2000, scoped, tag = 'scoped memory for patch_embedding.2']
  #allocation11 [shape = 'u32[2048]{0}', space=vmem, size = 0x2000, scoped, tag = 'scoped memory for patch_embedding.2']
  %s0 = inlined_call_operand.vmem [shape: bf16[16,256], index: 0, kind: input, shape index: {}]
  %s1 = inlined_call_operand.vmem [shape: bf16[256,32], index: 1, kind: input, shape index: {}]
  %s2 = inlined_call_operand.<no memory space> [shape: bf16[], index: 2, kind: input, shape index: {}]
  %s3 = inlined_call_operand.vmem [shape: f32[32], index: 3, kind: input, shape index: {}]
  %s4 = inlined_call_operand.<no memory space> [shape: f32[], index: 4, kind: input, shape index: {}]
  %s5 = inlined_call_operand.vmem [shape: f32[16,128], index: 5, kind: output, shape index: {}]
  %s6 = sld [smem:[#allocation0]]
  $region45: #{patch_embedding.2} parent=0
    _
  %s8 = ssub.s32 1, %s6
  %s9 = scalar_select 0, %s8, %s6
  %v10 = vstv %s2
  %v11 = vunpack.i.l.bf16 %v10
  %v13 = vunpack.i.h.bf16 %v10
  %v15 = vstv %s4
  loop: start=0, step=1, limit=4
  $region2: #{patch_embedding.2} parent=0 // loop_pre_header
    _
  $region3: #{patch_embedding.2} parent=0 // loop_header
    %s17 = sphi 0, %s21
    %p18 = scmp.ge.s32.totalorder %s17, 4
    %s27 = sphi 0, %s29
    %s30 = sphi 0, %s27
    %s31 = sphi 0, %s30
    %s47 = sphi 0, %s31
    %s51 = sphi 0, %s51
    %s53 = sphi 0, %s51
    %s54 = sphi 0, %s53
    %s68 = sphi 0, %s54
    %s72 = sphi 0, %s72
    %s74 = sphi 0, %s72
    %s75 = sphi 0, %s74
    %s89 = sphi 0, %s75
    %s95 = sphi 0, %s97
    %s98 = sphi 0, %s95
    %s99 = sphi 0, %s98
    %s115 = sphi 0, %s99
  $region4: #{patch_embedding.2} parent=0 // loop_header_branch
    %20 = sbr.rel (%p18) target = $region8
  $region5: #{patch_embedding.2} parent=0 // loop_body
    %s22 = ssub.s32 %s17, 1
    %s23 = ssub.s32 %s17, 2
    %s24 = sadd.s32 %s17, 1
    %s25 = ssub.s32 %s17, %s24
    %p26 = scmp.eq.s32.totalorder %s25, 0
    %s28 = sadd.s32 %s27, 1
    %s29 = scalar_select %p26, %s27, %s28
    %p32 = pneg %p26
    %p33 = scmp.eq.s32.totalorder %s17, 1
    %p34 = por %p32, %p33
    %p35 = scmp.ne.s32.totalorder %s27, %s30
    %p36 = scmp.eq.s32.totalorder %s17, 0
    %p37 = por %p35, %p36
    %p38 = scmp.ne.s32.totalorder %s27, %s30
    %p39 = scmp.eq.s32.totalorder %s22, 1
    %p40 = por %p38, %p39
    %p41 = scmp.ne.s32.totalorder %s30, %s31
    %p42 = scmp.eq.s32.totalorder %s22, 0
    %p43 = por %p41, %p42
    %p44 = scmp.ne.s32.totalorder %s30, %s31
    %p45 = scmp.eq.s32.totalorder %s23, 1
    %p46 = por %p44, %p45
    %p48 = scmp.ne.s32.totalorder %s31, %s47
    %p49 = scmp.eq.s32.totalorder %s23, 0
    %p50 = por %p48, %p49
    %s52 = sadd.s32 %s51, 1
    %p55 = scmp.eq.s32.totalorder %s17, 1
    %p56 = scmp.ne.s32.totalorder %s51, %s53
    %p57 = scmp.eq.s32.totalorder %s17, 0
    %p58 = por %p56, %p57
    %p59 = scmp.ne.s32.totalorder %s51, %s53
    %p60 = scmp.eq.s32.totalorder %s22, 1
    %p61 = por %p59, %p60
    %p62 = scmp.ne.s32.totalorder %s53, %s54
    %p63 = scmp.eq.s32.totalorder %s22, 0
    %p64 = por %p62, %p63
    %p65 = scmp.ne.s32.totalorder %s53, %s54
    %p66 = scmp.eq.s32.totalorder %s23, 1
    %p67 = por %p65, %p66
    %p69 = scmp.ne.s32.totalorder %s54, %s68
    %p70 = scmp.eq.s32.totalorder %s23, 0
    %p71 = por %p69, %p70
    %s73 = sadd.s32 %s72, 1
    %p76 = scmp.eq.s32.totalorder %s17, 1
    %p77 = scmp.ne.s32.totalorder %s72, %s74
    %p78 = scmp.eq.s32.totalorder %s17, 0
    %p79 = por %p77, %p78
    %p80 = scmp.ne.s32.totalorder %s72, %s74
    %p81 = scmp.eq.s32.totalorder %s22, 1
    %p82 = por %p80, %p81
    %p83 = scmp.ne.s32.totalorder %s74, %s75
    %p84 = scmp.eq.s32.totalorder %s22, 0
    %p85 = por %p83, %p84
    %p86 = scmp.ne.s32.totalorder %s74, %s75
    %p87 = scmp.eq.s32.totalorder %s23, 1
    %p88 = por %p86, %p87
    %p90 = scmp.ne.s32.totalorder %s75, %s89
    %p91 = scmp.eq.s32.totalorder %s23, 0
    %p92 = por %p90, %p91
    %s93 = ssub.s32 %s17, %s24
    %p94 = scmp.eq.s32.totalorder %s93, 0
    %s96 = sadd.s32 %s95, 1
    %s97 = scalar_select %p94, %s95, %s96
    %p100 = pneg %p94
    %p101 = scmp.eq.s32.totalorder %s17, 1
    %p102 = por %p100, %p101
    %p103 = scmp.ne.s32.totalorder %s95, %s98
    %p104 = scmp.eq.s32.totalorder %s17, 0
    %p105 = por %p103, %p104
    %p106 = scmp.ne.s32.totalorder %s95, %s98
    %p107 = scmp.eq.s32.totalorder %s22, 1
    %p108 = por %p106, %p107
    %p109 = scmp.ne.s32.totalorder %s98, %s99
    %p110 = scmp.eq.s32.totalorder %s22, 0
    %p111 = por %p109, %p110
    %p112 = scmp.ne.s32.totalorder %s98, %s99
    %p113 = scmp.eq.s32.totalorder %s23, 1
    %p114 = por %p112, %p113
    %p116 = scmp.ne.s32.totalorder %s99, %s115
    %p117 = scmp.eq.s32.totalorder %s23, 0
    %p118 = por %p116, %p117
    %p119 = scmp.le.s32.totalorder 1, %s17
    %p120 = scmp.lt.s32.totalorder %s17, 3
    %p121 = pnand %p119, %p120
    %p122 = pneg %p121
    // Predicated region
    $region9: #{patch_embedding.2} parent=5 // pred_check
      _
    $region10: #{patch_embedding.2} parent=5 // pred_check_branch
      %124 = sbr.rel (%p121) target = $region12
    $region11: #{patch_embedding.2} parent=5 // pred_region
      %s125 = ssub.s32 %s17, 1
      // Predicated region
      $region13: #{patch_embedding.2} parent=11 // pred_check
        %p126 = pneg %p64
      $region14: #{patch_embedding.2} parent=11 // pred_check_branch
        %128 = sbr.rel (%p126) target = $region16
      $region15: #{patch_embedding.2} parent=11 // pred_region
        _
      $region16: #{patch_embedding.2} parent=11 // pred_fallthru
        _
      // Predicated region
      $region17: #{patch_embedding.2} parent=11 // pred_check
        %p129 = pneg %p85
      $region18: #{patch_embedding.2} parent=11 // pred_check_branch
        %131 = sbr.rel (%p129) target = $region20
      $region19: #{patch_embedding.2} parent=11 // pred_region
        _
      $region20: #{patch_embedding.2} parent=11 // pred_fallthru
        _
    $region12: #{patch_embedding.2} parent=5 // pred_fallthru
      _
    %p132 = scmp.lt.s32.totalorder %s17, 2
    // Predicated region
    $region21: #{patch_embedding.2} parent=5 // pred_check
      %p133 = pneg %p132
    $region22: #{patch_embedding.2} parent=5 // pred_check_branch
      %135 = sbr.rel (%p133) target = $region24
    $region23: #{patch_embedding.2} parent=5 // pred_region
      // Predicated region
      $region25: #{patch_embedding.2} parent=23 // pred_check
        %p136 = pneg %p37
      $region26: #{patch_embedding.2} parent=23 // pred_check_branch
        %138 = sbr.rel (%p136) target = $region28
      $region27: #{patch_embedding.2} parent=23 // pred_region
        %p139 = scmp.lt.s32.totalorder %s17, 1
        %s140 = scalar_select %p139, %s17, 1
        %s141 = smul.addr %s140, 2
        %s142 = smul.addr %s141, 4
        %s143 = scalar_lea.vmem %s0, %s142
      $region28: #{patch_embedding.2} parent=23 // pred_fallthru
        _
    $region24: #{patch_embedding.2} parent=5 // pred_fallthru
      _
    %p144 = scmp.le.s32.totalorder 1, %s17
    %p145 = scmp.lt.s32.totalorder %s17, 3
    %p146 = pnand %p144, %p145
    %p147 = pneg %p146
    // Predicated region
    $region29: #{patch_embedding.2} parent=5 // pred_check
      _
    $region30: #{patch_embedding.2} parent=5 // pred_check_branch
      %149 = sbr.rel (%p146) target = $region32
    $region31: #{patch_embedding.2} parent=5 // pred_region
      #allocation12 [shape = 'u8[65536]{0}', space=vmem, size = 0x10000, dematerialized = true, scoped, tag = 'FusionAdapter Buffer %fusion.1 = bf16[256,128]{1,0:T(8,128)(2,1)} fusion(%param_1.3, %param_2.2), kind=kLoop, calls=%fused_computation.2.clone, metadata={op_name="jit(patch_embedding)/jit(_pad)/pad" stack_frame_id=13}']
      #allocation13 [shape = 'u8[512]{0}', space=vmem, size = 0x400, dematerialized = true, scoped, tag = 'FusionAdapter Buffer %fusion.2 = f32[1,128]{1,0:T(1,128)} fusion(%param_3.2, %param_4), kind=kLoop, calls=%fused_computation.4.clone, metadata={op_name="jit(patch_embedding)/reshape" stack_frame_id=16}']
      %s150 = ssub.s32 %s17, 1
      %p151 = scmp.lt.s32.totalorder %s22, 1
      %s152 = scalar_select %p151, %s22, 1
      %s153 = smul.addr %s152, 2
      %s154 = smul.addr %s153, 4
      %s155 = scalar_lea.vmem %s0, %s154
      %p156 = pneg %p43
      %p157 = pneg %p40
      %p158 = pneg %p64
      %p159 = pneg %p61
      %p160 = pneg %p85
      %p161 = pneg %p82
      %p162 = pneg %p111
      %p163 = pneg %p108
      %p164 = scmp.lt.s32.totalorder %s22, 1
      %s165 = scalar_select %p164, %s22, 1
      %s166 = smul.addr %s165, 8
      %s167 = scalar_lea.vmem %s5, %s166
      %p168 = scmp.lt.s32.totalorder %s22, 1
      %s169 = scalar_select %p168, %s22, 1
      %s170 = smul.addr %s169, 2
      %s171 = smul.addr %s170, 4
      %s172 = scalar_lea.vmem %s0, %s171
      %p173 = scmp.lt.s32.totalorder %s22, 1
      %s174 = scalar_select %p173, %s22, 1
      %s175 = smul.addr %s174, 8
      %s176 = scalar_lea.vmem %s5, %s175
      %s178 = sor.u32 255, 127
      %s179 = sand.u32 %s178, 85
      %s180 = sshrl.u32 %s179, 1
      %s181 = sor.u32 %s179, %s180
      %s182 = sand.u32 51, %s181
      %s183 = sshrl.u32 %s182, 2
      %s184 = sor.u32 %s182, %s183
      %s185 = sand.u32 15, %s184
      %v186 = vld [vmem:[%s1] sm:%s185]
      %v187 = vunpack.c.l.bf16 %v186
      %v188 = vunpack.c.h.bf16 %v186
      %v189 = vlaneseq
      %v190 = vand.u32 %v189, 127
      %vm192 = vcmp.lt.s32.totalorder %v190, 32
      %v193 = vsel %vm192, %v187, %v11
      %v194 = vpack.c.bf16 0.0, %v193
      %196 = vst [vmem:[#allocation12] sm:$0xf] %v194
      %s197 = scalar_lea.vmem %s1, 4
      %s199 = sor.u32 255, 127
      %s200 = sand.u32 %s199, 85
      %s201 = sshrl.u32 %s200, 1
      %s202 = sor.u32 %s200, %s201
      %s203 = sand.u32 51, %s202
      %s204 = sshrl.u32 %s203, 2
      %s205 = sor.u32 %s203, %s204
      %s206 = sand.u32 15, %s205
      %v207 = vld [vmem:[%s197] sm:%s206]
      %v208 = vunpack.c.l.bf16 %v207
      %v209 = vunpack.c.h.bf16 %v207
      %v210 = vlaneseq
      %v211 = vand.u32 %v210, 127
      %vm213 = vcmp.lt.s32.totalorder %v211, 32
      %v214 = vsel %vm213, %v208, %v11
      %s215 = scalar_lea.vmem [#allocation12], 4
      %v216 = vpack.c.bf16 0.0, %v214
      %218 = vst [vmem:[%s215] sm:$0xf] %v216
      %s219 = scalar_lea.vmem %s1, 8
      %s221 = sor.u32 255, 127
      %s222 = sand.u32 %s221, 85
      %s223 = sshrl.u32 %s222, 1
      %s224 = sor.u32 %s222, %s223
      %s225 = sand.u32 51, %s224
      %s226 = sshrl.u32 %s225, 2
      %s227 = sor.u32 %s225, %s226
      %s228 = sand.u32 15, %s227
      %v229 = vld [vmem:[%s219] sm:%s228]
      %v230 = vunpack.c.l.bf16 %v229
      %v231 = vunpack.c.h.bf16 %v229
      %v232 = vlaneseq
      %v233 = vand.u32 %v232, 127
      %vm235 = vcmp.lt.s32.totalorder %v233, 32
      %v236 = vsel %vm235, %v230, %v11
      %s237 = scalar_lea.vmem [#allocation12], 8
      %v238 = vpack.c.bf16 0.0, %v236
      %240 = vst [vmem:[%s237] sm:$0xf] %v238
      %s241 = scalar_lea.vmem %s1, 12
      %s243 = sor.u32 255, 127
      %s244 = sand.u32 %s243, 85
      %s245 = sshrl.u32 %s244, 1
      %s246 = sor.u32 %s244, %s245
      %s247 = sand.u32 51, %s246
      %s248 = sshrl.u32 %s247, 2
      %s249 = sor.u32 %s247, %s248
      %s250 = sand.u32 15, %s249
      %v251 = vld [vmem:[%s241] sm:%s250]
      %v252 = vunpack.c.l.bf16 %v251
      %v253 = vunpack.c.h.bf16 %v251
      %v254 = vlaneseq
      %v255 = vand.u32 %v254, 127
      %vm257 = vcmp.lt.s32.totalorder %v255, 32
      %v258 = vsel %vm257, %v252, %v11
      %s259 = scalar_lea.vmem [#allocation12], 12
      %v260 = vpack.c.bf16 0.0, %v258
      %262 = vst [vmem:[%s259] sm:$0xf] %v260
      %s263 = scalar_lea.vmem %s1, 16
      %s265 = sor.u32 255, 127
      %s266 = sand.u32 %s265, 85
      %s267 = sshrl.u32 %s266, 1
      %s268 = sor.u32 %s266, %s267
      %s269 = sand.u32 51, %s268
      %s270 = sshrl.u32 %s269, 2
      %s271 = sor.u32 %s269, %s270
      %s272 = sand.u32 15, %s271
      %v273 = vld [vmem:[%s263] sm:%s272]
      %v274 = vunpack.c.l.bf16 %v273
      %v275 = vunpack.c.h.bf16 %v273
      %v276 = vlaneseq
      %v277 = vand.u32 %v276, 127
      %vm279 = vcmp.lt.s32.totalorder %v277, 32
      %v280 = vsel %vm279, %v274, %v11
      %s281 = scalar_lea.vmem [#allocation12], 16
      %v282 = vpack.c.bf16 0.0, %v280
      %284 = vst [vmem:[%s281] sm:$0xf] %v282
      %s285 = scalar_lea.vmem %s1, 20
      %s287 = sor.u32 255, 127
      %s288 = sand.u32 %s287, 85
      %s289 = sshrl.u32 %s288, 1
      %s290 = sor.u32 %s288, %s289
      %s291 = sand.u32 51, %s290
      %s292 = sshrl.u32 %s291, 2
      %s293 = sor.u32 %s291, %s292
      %s294 = sand.u32 15, %s293
      %v295 = vld [vmem:[%s285] sm:%s294]
      %v296 = vunpack.c.l.bf16 %v295
      %v297 = vunpack.c.h.bf16 %v295
      %v298 = vlaneseq
      %v299 = vand.u32 %v298, 127
      %vm301 = vcmp.lt.s32.totalorder %v299, 32
      %v302 = vsel %vm301, %v296, %v11
      %s303 = scalar_lea.vmem [#allocation12], 20
      %v304 = vpack.c.bf16 0.0, %v302
      %306 = vst [vmem:[%s303] sm:$0xf] %v304
      %s307 = scalar_lea.vmem %s1, 24
      %s309 = sor.u32 255, 127
      %s310 = sand.u32 %s309, 85
      %s311 = sshrl.u32 %s310, 1
      %s312 = sor.u32 %s310, %s311
      %s313 = sand.u32 51, %s312
      %s314 = sshrl.u32 %s313, 2
      %s315 = sor.u32 %s313, %s314
      %s316 = sand.u32 15, %s315
      %v317 = vld [vmem:[%s307] sm:%s316]
      %v318 = vunpack.c.l.bf16 %v317
      %v319 = vunpack.c.h.bf16 %v317
      %v320 = vlaneseq
      %v321 = vand.u32 %v320, 127
      %vm323 = vcmp.lt.s32.totalorder %v321, 32
      %v324 = vsel %vm323, %v318, %v11
      %s325 = scalar_lea.vmem [#allocation12], 24
      %v326 = vpack.c.bf16 0.0, %v324
      %328 = vst [vmem:[%s325] sm:$0xf] %v326
      %s329 = scalar_lea.vmem %s1, 28
      %s331 = sor.u32 255, 127
      %s332 = sand.u32 %s331, 85
      %s333 = sshrl.u32 %s332, 1
      %s334 = sor.u32 %s332, %s333
      %s335 = sand.u32 51, %s334
      %s336 = sshrl.u32 %s335, 2
      %s337 = sor.u32 %s335, %s336
      %s338 = sand.u32 15, %s337
      %v339 = vld [vmem:[%s329] sm:%s338]
      %v340 = vunpack.c.l.bf16 %v339
      %v341 = vunpack.c.h.bf16 %v339
      %v342 = vlaneseq
      %v343 = vand.u32 %v342, 127
      %vm345 = vcmp.lt.s32.totalorder %v343, 32
      %v346 = vsel %vm345, %v340, %v11
      %s347 = scalar_lea.vmem [#allocation12], 28
      %v348 = vpack.c.bf16 0.0, %v346
      %350 = vst [vmem:[%s347] sm:$0xf] %v348
      %s351 = scalar_lea.vmem %s1, 32
      %s353 = sor.u32 255, 127
      %s354 = sand.u32 %s353, 85
      %s355 = sshrl.u32 %s354, 1
      %s356 = sor.u32 %s354, %s355
      %s357 = sand.u32 51, %s356
      %s358 = sshrl.u32 %s357, 2
      %s359 = sor.u32 %s357, %s358
      %s360 = sand.u32 15, %s359
      %v361 = vld [vmem:[%s351] sm:%s360]
      %v362 = vunpack.c.l.bf16 %v361
      %v363 = vunpack.c.h.bf16 %v361
      %v364 = vlaneseq
      %v365 = vand.u32 %v364, 127
      %vm367 = vcmp.lt.s32.totalorder %v365, 32
      %v368 = vsel %vm367, %v362, %v11
      %s369 = scalar_lea.vmem [#allocation12], 32
      %v370 = vpack.c.bf16 0.0, %v368
      %372 = vst [vmem:[%s369] sm:$0xf] %v370
      %s373 = scalar_lea.vmem %s1, 36
      %s375 = sor.u32 255, 127
      %s376 = sand.u32 %s375, 85
      %s377 = sshrl.u32 %s376, 1
      %s378 = sor.u32 %s376, %s377
      %s379 = sand.u32 51, %s378
      %s380 = sshrl.u32 %s379, 2
      %s381 = sor.u32 %s379, %s380
      %s382 = sand.u32 15, %s381
      %v383 = vld [vmem:[%s373] sm:%s382]
      %v384 = vunpack.c.l.bf16 %v383
      %v385 = vunpack.c.h.bf16 %v383
      %v386 = vlaneseq
      %v387 = vand.u32 %v386, 127
      %vm389 = vcmp.lt.s32.totalorder %v387, 32
      %v390 = vsel %vm389, %v384, %v11
      %s391 = scalar_lea.vmem [#allocation12], 36
      %v392 = vpack.c.bf16 0.0, %v390
      %394 = vst [vmem:[%s391] sm:$0xf] %v392
      %s395 = scalar_lea.vmem %s1, 40
      %s397 = sor.u32 255, 127
      %s398 = sand.u32 %s397, 85
      %s399 = sshrl.u32 %s398, 1
      %s400 = sor.u32 %s398, %s399
      %s401 = sand.u32 51, %s400
      %s402 = sshrl.u32 %s401, 2
      %s403 = sor.u32 %s401, %s402
      %s404 = sand.u32 15, %s403
      %v405 = vld [vmem:[%s395] sm:%s404]
      %v406 = vunpack.c.l.bf16 %v405
      %v407 = vunpack.c.h.bf16 %v405
      %v408 = vlaneseq
      %v409 = vand.u32 %v408, 127
      %vm411 = vcmp.lt.s32.totalorder %v409, 32
      %v412 = vsel %vm411, %v406, %v11
      %s413 = scalar_lea.vmem [#allocation12], 40
      %v414 = vpack.c.bf16 0.0, %v412
      %416 = vst [vmem:[%s413] sm:$0xf] %v414
      %s417 = scalar_lea.vmem %s1, 44
      %s419 = sor.u32 255, 127
      %s420 = sand.u32 %s419, 85
      %s421 = sshrl.u32 %s420, 1
      %s422 = sor.u32 %s420, %s421
      %s423 = sand.u32 51, %s422
      %s424 = sshrl.u32 %s423, 2
      %s425 = sor.u32 %s423, %s424
      %s426 = sand.u32 15, %s425
      %v427 = vld [vmem:[%s417] sm:%s426]
      %v428 = vunpack.c.l.bf16 %v427
      %v429 = vunpack.c.h.bf16 %v427
      %v430 = vlaneseq
      %v431 = vand.u32 %v430, 127
      %vm433 = vcmp.lt.s32.totalorder %v431, 32
      %v434 = vsel %vm433, %v428, %v11
      %s435 = scalar_lea.vmem [#allocation12], 44
      %v436 = vpack.c.bf16 0.0, %v434
      %438 = vst [vmem:[%s435] sm:$0xf] %v436
      %s439 = scalar_lea.vmem %s1, 48
      %s441 = sor.u32 255, 127
      %s442 = sand.u32 %s441, 85
      %s443 = sshrl.u32 %s442, 1
      %s444 = sor.u32 %s442, %s443
      %s445 = sand.u32 51, %s444
      %s446 = sshrl.u32 %s445, 2
      %s447 = sor.u32 %s445, %s446
      %s448 = sand.u32 15, %s447
      %v449 = vld [vmem:[%s439] sm:%s448]
      %v450 = vunpack.c.l.bf16 %v449
      %v451 = vunpack.c.h.bf16 %v449
      %v452 = vlaneseq
      %v453 = vand.u32 %v452, 127
      %vm455 = vcmp.lt.s32.totalorder %v453, 32
      %v456 = vsel %vm455, %v450, %v11
      %s457 = scalar_lea.vmem [#allocation12], 48
      %v458 = vpack.c.bf16 0.0, %v456
      %460 = vst [vmem:[%s457] sm:$0xf] %v458
      %s461 = scalar_lea.vmem %s1, 52
      %s463 = sor.u32 255, 127
      %s464 = sand.u32 %s463, 85
      %s465 = sshrl.u32 %s464, 1
      %s466 = sor.u32 %s464, %s465
      %s467 = sand.u32 51, %s466
      %s468 = sshrl.u32 %s467, 2
      %s469 = sor.u32 %s467, %s468
      %s470 = sand.u32 15, %s469
      %v471 = vld [vmem:[%s461] sm:%s470]
      %v472 = vunpack.c.l.bf16 %v471
      %v473 = vunpack.c.h.bf16 %v471
      %v474 = vlaneseq
      %v475 = vand.u32 %v474, 127
      %vm477 = vcmp.lt.s32.totalorder %v475, 32
      %v478 = vsel %vm477, %v472, %v11
      %s479 = scalar_lea.vmem [#allocation12], 52
      %v480 = vpack.c.bf16 0.0, %v478
      %482 = vst [vmem:[%s479] sm:$0xf] %v480
      %s483 = scalar_lea.vmem %s1, 56
      %s485 = sor.u32 255, 127
      %s486 = sand.u32 %s485, 85
      %s487 = sshrl.u32 %s486, 1
      %s488 = sor.u32 %s486, %s487
      %s489 = sand.u32 51, %s488
      %s490 = sshrl.u32 %s489, 2
      %s491 = sor.u32 %s489, %s490
      %s492 = sand.u32 15, %s491
      %v493 = vld [vmem:[%s483] sm:%s492]
      %v494 = vunpack.c.l.bf16 %v493
      %v495 = vunpack.c.h.bf16 %v493
      %v496 = vlaneseq
      %v497 = vand.u32 %v496, 127
      %vm499 = vcmp.lt.s32.totalorder %v497, 32
      %v500 = vsel %vm499, %v494, %v11
      %s501 = scalar_lea.vmem [#allocation12], 56
      %v502 = vpack.c.bf16 0.0, %v500
      %504 = vst [vmem:[%s501] sm:$0xf] %v502
      %s505 = scalar_lea.vmem %s1, 60
      %s507 = sor.u32 255, 127
      %s508 = sand.u32 %s507, 85
      %s509 = sshrl.u32 %s508, 1
      %s510 = sor.u32 %s508, %s509
      %s511 = sand.u32 51, %s510
      %s512 = sshrl.u32 %s511, 2
      %s513 = sor.u32 %s511, %s512
      %s514 = sand.u32 15, %s513
      %v515 = vld [vmem:[%s505] sm:%s514]
      %v516 = vunpack.c.l.bf16 %v515
      %v517 = vunpack.c.h.bf16 %v515
      %v518 = vlaneseq
      %v519 = vand.u32 %v518, 127
      %vm521 = vcmp.lt.s32.totalorder %v519, 32
      %v522 = vsel %vm521, %v516, %v11
      %s523 = scalar_lea.vmem [#allocation12], 60
      %v524 = vpack.c.bf16 0.0, %v522
      %526 = vst [vmem:[%s523] sm:$0xf] %v524
      %s527 = scalar_lea.vmem %s1, 64
      %s529 = sor.u32 255, 127
      %s530 = sand.u32 %s529, 85
      %s531 = sshrl.u32 %s530, 1
      %s532 = sor.u32 %s530, %s531
      %s533 = sand.u32 51, %s532
      %s534 = sshrl.u32 %s533, 2
      %s535 = sor.u32 %s533, %s534
      %s536 = sand.u32 15, %s535
      %v537 = vld [vmem:[%s527] sm:%s536]
      %v538 = vunpack.c.l.bf16 %v537
      %v539 = vunpack.c.h.bf16 %v537
      %v540 = vlaneseq
      %v541 = vand.u32 %v540, 127
      %vm543 = vcmp.lt.s32.totalorder %v541, 32
      %v544 = vsel %vm543, %v538, %v11
      %s545 = scalar_lea.vmem [#allocation12], 64
      %v546 = vpack.c.bf16 0.0, %v544
      %548 = vst [vmem:[%s545] sm:$0xf] %v546
      %s549 = scalar_lea.vmem %s1, 68
      %s551 = sor.u32 255, 127
      %s552 = sand.u32 %s551, 85
      %s553 = sshrl.u32 %s552, 1
      %s554 = sor.u32 %s552, %s553
      %s555 = sand.u32 51, %s554
      %s556 = sshrl.u32 %s555, 2
      %s557 = sor.u32 %s555, %s556
      %s558 = sand.u32 15, %s557
      %v559 = vld [vmem:[%s549] sm:%s558]
      %v560 = vunpack.c.l.bf16 %v559
      %v561 = vunpack.c.h.bf16 %v559
      %v562 = vlaneseq
      %v563 = vand.u32 %v562, 127
      %vm565 = vcmp.lt.s32.totalorder %v563, 32
      %v566 = vsel %vm565, %v560, %v11
      %s567 = scalar_lea.vmem [#allocation12], 68
      %v568 = vpack.c.bf16 0.0, %v566
      %570 = vst [vmem:[%s567] sm:$0xf] %v568
      %s571 = scalar_lea.vmem %s1, 72
      %s573 = sor.u32 255, 127
      %s574 = sand.u32 %s573, 85
      %s575 = sshrl.u32 %s574, 1
      %s576 = sor.u32 %s574, %s575
      %s577 = sand.u32 51, %s576
      %s578 = sshrl.u32 %s577, 2
      %s579 = sor.u32 %s577, %s578
      %s580 = sand.u32 15, %s579
      %v581 = vld [vmem:[%s571] sm:%s580]
      %v582 = vunpack.c.l.bf16 %v581
      %v583 = vunpack.c.h.bf16 %v581
      %v584 = vlaneseq
      %v585 = vand.u32 %v584, 127
      %vm587 = vcmp.lt.s32.totalorder %v585, 32
      %v588 = vsel %vm587, %v582, %v11
      %s589 = scalar_lea.vmem [#allocation12], 72
      %v590 = vpack.c.bf16 0.0, %v588
      %592 = vst [vmem:[%s589] sm:$0xf] %v590
      %s593 = scalar_lea.vmem %s1, 76
      %s595 = sor.u32 255, 127
      %s596 = sand.u32 %s595, 85
      %s597 = sshrl.u32 %s596, 1
      %s598 = sor.u32 %s596, %s597
      %s599 = sand.u32 51, %s598
      %s600 = sshrl.u32 %s599, 2
      %s601 = sor.u32 %s599, %s600
      %s602 = sand.u32 15, %s601
      %v603 = vld [vmem:[%s593] sm:%s602]
      %v604 = vunpack.c.l.bf16 %v603
      %v605 = vunpack.c.h.bf16 %v603
      %v606 = vlaneseq
      %v607 = vand.u32 %v606, 127
      %vm609 = vcmp.lt.s32.totalorder %v607, 32
      %v610 = vsel %vm609, %v604, %v11
      %s611 = scalar_lea.vmem [#allocation12], 76
      %v612 = vpack.c.bf16 0.0, %v610
      %614 = vst [vmem:[%s611] sm:$0xf] %v612
      %s615 = scalar_lea.vmem %s1, 80
      %s617 = sor.u32 255, 127
      %s618 = sand.u32 %s617, 85
      %s619 = sshrl.u32 %s618, 1
      %s620 = sor.u32 %s618, %s619
      %s621 = sand.u32 51, %s620
      %s622 = sshrl.u32 %s621, 2
      %s623 = sor.u32 %s621, %s622
      %s624 = sand.u32 15, %s623
      %v625 = vld [vmem:[%s615] sm:%s624]
      %v626 = vunpack.c.l.bf16 %v625
      %v627 = vunpack.c.h.bf16 %v625
      %v628 = vlaneseq
      %v629 = vand.u32 %v628, 127
      %vm631 = vcmp.lt.s32.totalorder %v629, 32
      %v632 = vsel %vm631, %v626, %v11
      %s633 = scalar_lea.vmem [#allocation12], 80
      %v634 = vpack.c.bf16 0.0, %v632
      %636 = vst [vmem:[%s633] sm:$0xf] %v634
      %s637 = scalar_lea.vmem %s1, 84
      %s639 = sor.u32 255, 127
      %s640 = sand.u32 %s639, 85
      %s641 = sshrl.u32 %s640, 1
      %s642 = sor.u32 %s640, %s641
      %s643 = sand.u32 51, %s642
      %s644 = sshrl.u32 %s643, 2
      %s645 = sor.u32 %s643, %s644
      %s646 = sand.u32 15, %s645
      %v647 = vld [vmem:[%s637] sm:%s646]
      %v648 = vunpack.c.l.bf16 %v647
      %v649 = vunpack.c.h.bf16 %v647
      %v650 = vlaneseq
      %v651 = vand.u32 %v650, 127
      %vm653 = vcmp.lt.s32.totalorder %v651, 32
      %v654 = vsel %vm653, %v648, %v11
      %s655 = scalar_lea.vmem [#allocation12], 84
      %v656 = vpack.c.bf16 0.0, %v654
      %658 = vst [vmem:[%s655] sm:$0xf] %v656
      %s659 = scalar_lea.vmem %s1, 88
      %s661 = sor.u32 255, 127
      %s662 = sand.u32 %s661, 85
      %s663 = sshrl.u32 %s662, 1
      %s664 = sor.u32 %s662, %s663
      %s665 = sand.u32 51, %s664
      %s666 = sshrl.u32 %s665, 2
      %s667 = sor.u32 %s665, %s666
      %s668 = sand.u32 15, %s667
      %v669 = vld [vmem:[%s659] sm:%s668]
      %v670 = vunpack.c.l.bf16 %v669
      %v671 = vunpack.c.h.bf16 %v669
      %v672 = vlaneseq
      %v673 = vand.u32 %v672, 127
      %vm675 = vcmp.lt.s32.totalorder %v673, 32
      %v676 = vsel %vm675, %v670, %v11
      %s677 = scalar_lea.vmem [#allocation12], 88
      %v678 = vpack.c.bf16 0.0, %v676
      %680 = vst [vmem:[%s677] sm:$0xf] %v678
      %s681 = scalar_lea.vmem %s1, 92
      %s683 = sor.u32 255, 127
      %s684 = sand.u32 %s683, 85
      %s685 = sshrl.u32 %s684, 1
      %s686 = sor.u32 %s684, %s685
      %s687 = sand.u32 51, %s686
      %s688 = sshrl.u32 %s687, 2
      %s689 = sor.u32 %s687, %s688
      %s690 = sand.u32 15, %s689
      %v691 = vld [vmem:[%s681] sm:%s690]
      %v692 = vunpack.c.l.bf16 %v691
      %v693 = vunpack.c.h.bf16 %v691
      %v694 = vlaneseq
      %v695 = vand.u32 %v694, 127
      %vm697 = vcmp.lt.s32.totalorder %v695, 32
      %v698 = vsel %vm697, %v692, %v11
      %s699 = scalar_lea.vmem [#allocation12], 92
      %v700 = vpack.c.bf16 0.0, %v698
      %702 = vst [vmem:[%s699] sm:$0xf] %v700
      %s703 = scalar_lea.vmem %s1, 96
      %s705 = sor.u32 255, 127
      %s706 = sand.u32 %s705, 85
      %s707 = sshrl.u32 %s706, 1
      %s708 = sor.u32 %s706, %s707
      %s709 = sand.u32 51, %s708
      %s710 = sshrl.u32 %s709, 2
      %s711 = sor.u32 %s709, %s710
      %s712 = sand.u32 15, %s711
      %v713 = vld [vmem:[%s703] sm:%s712]
      %v714 = vunpack.c.l.bf16 %v713
      %v715 = vunpack.c.h.bf16 %v713
      %v716 = vlaneseq
      %v717 = vand.u32 %v716, 127
      %vm719 = vcmp.lt.s32.totalorder %v717, 32
      %v720 = vsel %vm719, %v714, %v11
      %s721 = scalar_lea.vmem [#allocation12], 96
      %v722 = vpack.c.bf16 0.0, %v720
      %724 = vst [vmem:[%s721] sm:$0xf] %v722
      %s725 = scalar_lea.vmem %s1, 100
      %s727 = sor.u32 255, 127
      %s728 = sand.u32 %s727, 85
      %s729 = sshrl.u32 %s728, 1
      %s730 = sor.u32 %s728, %s729
      %s731 = sand.u32 51, %s730
      %s732 = sshrl.u32 %s731, 2
      %s733 = sor.u32 %s731, %s732
      %s734 = sand.u32 15, %s733
      %v735 = vld [vmem:[%s725] sm:%s734]
      %v736 = vunpack.c.l.bf16 %v735
      %v737 = vunpack.c.h.bf16 %v735
      %v738 = vlaneseq
      %v739 = vand.u32 %v738, 127
      %vm741 = vcmp.lt.s32.totalorder %v739, 32
      %v742 = vsel %vm741, %v736, %v11
      %s743 = scalar_lea.vmem [#allocation12], 100
      %v744 = vpack.c.bf16 0.0, %v742
      %746 = vst [vmem:[%s743] sm:$0xf] %v744
      %s747 = scalar_lea.vmem %s1, 104
      %s749 = sor.u32 255, 127
      %s750 = sand.u32 %s749, 85
      %s751 = sshrl.u32 %s750, 1
      %s752 = sor.u32 %s750, %s751
      %s753 = sand.u32 51, %s752
      %s754 = sshrl.u32 %s753, 2
      %s755 = sor.u32 %s753, %s754
      %s756 = sand.u32 15, %s755
      %v757 = vld [vmem:[%s747] sm:%s756]
      %v758 = vunpack.c.l.bf16 %v757
      %v759 = vunpack.c.h.bf16 %v757
      %v760 = vlaneseq
      %v761 = vand.u32 %v760, 127
      %vm763 = vcmp.lt.s32.totalorder %v761, 32
      %v764 = vsel %vm763, %v758, %v11
      %s765 = scalar_lea.vmem [#allocation12], 104
      %v766 = vpack.c.bf16 0.0, %v764
      %768 = vst [vmem:[%s765] sm:$0xf] %v766
      %s769 = scalar_lea.vmem %s1, 108
      %s771 = sor.u32 255, 127
      %s772 = sand.u32 %s771, 85
      %s773 = sshrl.u32 %s772, 1
      %s774 = sor.u32 %s772, %s773
      %s775 = sand.u32 51, %s774
      %s776 = sshrl.u32 %s775, 2
      %s777 = sor.u32 %s775, %s776
      %s778 = sand.u32 15, %s777
      %v779 = vld [vmem:[%s769] sm:%s778]
      %v780 = vunpack.c.l.bf16 %v779
      %v781 = vunpack.c.h.bf16 %v779
      %v782 = vlaneseq
      %v783 = vand.u32 %v782, 127
      %vm785 = vcmp.lt.s32.totalorder %v783, 32
      %v786 = vsel %vm785, %v780, %v11
      %s787 = scalar_lea.vmem [#allocation12], 108
      %v788 = vpack.c.bf16 0.0, %v786
      %790 = vst [vmem:[%s787] sm:$0xf] %v788
      %s791 = scalar_lea.vmem %s1, 112
      %s793 = sor.u32 255, 127
      %s794 = sand.u32 %s793, 85
      %s795 = sshrl.u32 %s794, 1
      %s796 = sor.u32 %s794, %s795
      %s797 = sand.u32 51, %s796
      %s798 = sshrl.u32 %s797, 2
      %s799 = sor.u32 %s797, %s798
      %s800 = sand.u32 15, %s799
      %v801 = vld [vmem:[%s791] sm:%s800]
      %v802 = vunpack.c.l.bf16 %v801
      %v803 = vunpack.c.h.bf16 %v801
      %v804 = vlaneseq
      %v805 = vand.u32 %v804, 127
      %vm807 = vcmp.lt.s32.totalorder %v805, 32
      %v808 = vsel %vm807, %v802, %v11
      %s809 = scalar_lea.vmem [#allocation12], 112
      %v810 = vpack.c.bf16 0.0, %v808
      %812 = vst [vmem:[%s809] sm:$0xf] %v810
      %s813 = scalar_lea.vmem %s1, 116
      %s815 = sor.u32 255, 127
      %s816 = sand.u32 %s815, 85
      %s817 = sshrl.u32 %s816, 1
      %s818 = sor.u32 %s816, %s817
      %s819 = sand.u32 51, %s818
      %s820 = sshrl.u32 %s819, 2
      %s821 = sor.u32 %s819, %s820
      %s822 = sand.u32 15, %s821
      %v823 = vld [vmem:[%s813] sm:%s822]
      %v824 = vunpack.c.l.bf16 %v823
      %v825 = vunpack.c.h.bf16 %v823
      %v826 = vlaneseq
      %v827 = vand.u32 %v826, 127
      %vm829 = vcmp.lt.s32.totalorder %v827, 32
      %v830 = vsel %vm829, %v824, %v11
      %s831 = scalar_lea.vmem [#allocation12], 116
      %v832 = vpack.c.bf16 0.0, %v830
      %834 = vst [vmem:[%s831] sm:$0xf] %v832
      %s835 = scalar_lea.vmem %s1, 120
      %s837 = sor.u32 255, 127
      %s838 = sand.u32 %s837, 85
      %s839 = sshrl.u32 %s838, 1
      %s840 = sor.u32 %s838, %s839
      %s841 = sand.u32 51, %s840
      %s842 = sshrl.u32 %s841, 2
      %s843 = sor.u32 %s841, %s842
      %s844 = sand.u32 15, %s843
      %v845 = vld [vmem:[%s835] sm:%s844]
      %v846 = vunpack.c.l.bf16 %v845
      %v847 = vunpack.c.h.bf16 %v845
      %v848 = vlaneseq
      %v849 = vand.u32 %v848, 127
      %vm851 = vcmp.lt.s32.totalorder %v849, 32
      %v852 = vsel %vm851, %v846, %v11
      %s853 = scalar_lea.vmem [#allocation12], 120
      %v854 = vpack.c.bf16 0.0, %v852
      %856 = vst [vmem:[%s853] sm:$0xf] %v854
      %s857 = scalar_lea.vmem %s1, 124
      %s859 = sor.u32 255, 127
      %s860 = sand.u32 %s859, 85
      %s861 = sshrl.u32 %s860, 1
      %s862 = sor.u32 %s860, %s861
      %s863 = sand.u32 51, %s862
      %s864 = sshrl.u32 %s863, 2
      %s865 = sor.u32 %s863, %s864
      %s866 = sand.u32 15, %s865
      %v867 = vld [vmem:[%s857] sm:%s866]
      %v868 = vunpack.c.l.bf16 %v867
      %v869 = vunpack.c.h.bf16 %v867
      %v870 = vlaneseq
      %v871 = vand.u32 %v870, 127
      %vm873 = vcmp.lt.s32.totalorder %v871, 32
      %v874 = vsel %vm873, %v868, %v11
      %s875 = scalar_lea.vmem [#allocation12], 124
      %v876 = vpack.c.bf16 0.0, %v874
      %878 = vst [vmem:[%s875] sm:$0xf] %v876
      %v879 = vld [vmem:[%s3] sm:$0x1]
      %v880 = vlaneseq
      %vm882 = vcmp.lt.s32.totalorder %v880, 32
      %v883 = vsel %vm882, %v879, %v15
      %885 = vst [vmem:[#allocation13] sm:$0x1] %v883
      %v887 = vld [vmem:[%s172] sm:$0xff]
      %v888 = vld [vmem:[#allocation12] sm:$0xf]
      %v889 = vld [vmem:[#allocation12 + $0x4] sm:$0xf]
      %v890 = vld [vmem:[#allocation12 + $0x8] sm:$0xf]
      %v891 = vld [vmem:[#allocation12 + $0xc] sm:$0xf]
      %v892 = vld [vmem:[#allocation12 + $0x10] sm:$0xf]
      %v893 = vld [vmem:[#allocation12 + $0x14] sm:$0xf]
      %v894 = vld [vmem:[#allocation12 + $0x18] sm:$0xf]
      %v895 = vld [vmem:[#allocation12 + $0x1c] sm:$0xf]
      %v896 = vld [vmem:[#allocation12 + $0x20] sm:$0xf]
      %v897 = vld [vmem:[#allocation12 + $0x24] sm:$0xf]
      %v898 = vld [vmem:[#allocation12 + $0x28] sm:$0xf]
      %v899 = vld [vmem:[#allocation12 + $0x2c] sm:$0xf]
      %v900 = vld [vmem:[#allocation12 + $0x30] sm:$0xf]
      %v901 = vld [vmem:[#allocation12 + $0x34] sm:$0xf]
      %v902 = vld [vmem:[#allocation12 + $0x38] sm:$0xf]
      %v903 = vld [vmem:[#allocation12 + $0x3c] sm:$0xf]
      %v904 = vld [vmem:[#allocation12 + $0x40] sm:$0xf]
      %v905 = vld [vmem:[#allocation12 + $0x44] sm:$0xf]
      %v906 = vld [vmem:[#allocation12 + $0x48] sm:$0xf]
      %v907 = vld [vmem:[#allocation12 + $0x4c] sm:$0xf]
      %v908 = vld [vmem:[#allocation12 + $0x50] sm:$0xf]
      %v909 = vld [vmem:[#allocation12 + $0x54] sm:$0xf]
      %v910 = vld [vmem:[#allocation12 + $0x58] sm:$0xf]
      %v911 = vld [vmem:[#allocation12 + $0x5c] sm:$0xf]
      %v912 = vld [vmem:[#allocation12 + $0x60] sm:$0xf]
      %v913 = vld [vmem:[#allocation12 + $0x64] sm:$0xf]
      %v914 = vld [vmem:[#allocation12 + $0x68] sm:$0xf]
      %v915 = vld [vmem:[#allocation12 + $0x6c] sm:$0xf]
      %v916 = vld [vmem:[#allocation12 + $0x70] sm:$0xf]
      %v917 = vld [vmem:[#allocation12 + $0x74] sm:$0xf]
      %v918 = vld [vmem:[#allocation12 + $0x78] sm:$0xf]
      %v919 = vld [vmem:[#allocation12 + $0x7c] sm:$0xf]
      %v920 = vld [vmem:[#allocation13] sm:$0x1]
      %v922 = vlaneseq
      %v923 = vshrl.u32 %v922, 7
      %v924 = vsub.s32 0, %v923
      %v925 = vrot.slane %v920, %v924
      %v928 = vunpack.c.l.b16 %v887
      %v929 = vunpack.c.h.b16 %v887
      %v930 = vpack.c.b16 %v928, %v928
      %v931 = vpack.c.b16 %v929, %v929
      %v966 = vunpack.c.l.b16 %v888
      %v967 = vunpack.c.l.b16 %v889
      %v968 = vunpack.c.l.b16 %v890
      %v969 = vunpack.c.l.b16 %v891
      %v970 = vunpack.c.l.b16 %v892
      %v971 = vunpack.c.l.b16 %v893
      %v972 = vunpack.c.l.b16 %v894
      %v973 = vunpack.c.l.b16 %v895
      %v974 = vunpack.c.l.b16 %v896
      %v975 = vunpack.c.l.b16 %v897
      %v976 = vunpack.c.l.b16 %v898
      %v977 = vunpack.c.l.b16 %v899
      %v978 = vunpack.c.l.b16 %v900
      %v979 = vunpack.c.l.b16 %v901
      %v980 = vunpack.c.l.b16 %v902
      %v981 = vunpack.c.l.b16 %v903
      %v982 = vunpack.c.l.b16 %v904
      %v983 = vunpack.c.l.b16 %v905
      %v984 = vunpack.c.l.b16 %v906
      %v985 = vunpack.c.l.b16 %v907
      %v986 = vunpack.c.l.b16 %v908
      %v987 = vunpack.c.l.b16 %v909
      %v988 = vunpack.c.l.b16 %v910
      %v989 = vunpack.c.l.b16 %v911
      %v990 = vunpack.c.l.b16 %v912
      %v991 = vunpack.c.l.b16 %v913
      %v992 = vunpack.c.l.b16 %v914
      %v993 = vunpack.c.l.b16 %v915
      %v994 = vunpack.c.l.b16 %v916
      %v995 = vunpack.c.l.b16 %v917
      %v996 = vunpack.c.l.b16 %v918
      %v997 = vunpack.c.l.b16 %v919
      %v998 = vpack.c.b16 %v967, %v966
      %v999 = vpack.c.b16 %v969, %v968
      %v1000 = vpack.c.b16 %v971, %v970
      %v1001 = vpack.c.b16 %v973, %v972
      %v1002 = vpack.c.b16 %v975, %v974
      %v1003 = vpack.c.b16 %v977, %v976
      %v1004 = vpack.c.b16 %v979, %v978
      %v1005 = vpack.c.b16 %v981, %v980
      %v1006 = vpack.c.b16 %v983, %v982
      %v1007 = vpack.c.b16 %v985, %v984
      %v1008 = vpack.c.b16 %v987, %v986
      %v1009 = vpack.c.b16 %v989, %v988
      %v1010 = vpack.c.b16 %v991, %v990
      %v1011 = vpack.c.b16 %v993, %v992
      %v1012 = vpack.c.b16 %v995, %v994
      %v1013 = vpack.c.b16 %v997, %v996
      %1030 = vmatprep.subr.bf16.mxu0 0
      %1031 = vmatpush1.bf16.msra.mxu0 %v998
      %1032 = vmatprep.subr.bf16.mxu0 0
      %1033 = vmatpush1.bf16.msra.mxu0 %v999
      %1034 = vmatprep.subr.bf16.mxu0 0
      %1035 = vmatpush1.bf16.msra.mxu0 %v1000
      %1036 = vmatprep.subr.bf16.mxu0 0
      %1037 = vmatpush1.bf16.msra.mxu0 %v1001
      %1038 = vmatprep.subr.bf16.mxu0 0
      %1039 = vmatpush1.bf16.msra.mxu0 %v1002
      %1040 = vmatprep.subr.bf16.mxu0 0
      %1041 = vmatpush1.bf16.msra.mxu0 %v1003
      %1042 = vmatprep.subr.bf16.mxu0 0
      %1043 = vmatpush1.bf16.msra.mxu0 %v1004
      %1044 = vmatprep.subr.bf16.mxu0 0
      %1045 = vmatpush1.bf16.msra.mxu0 %v1005
      %1046 = vmatprep.subr.bf16.mxu0 0
      %1047 = vmatpush1.bf16.msra.mxu0 %v1006
      %1048 = vmatprep.subr.bf16.mxu0 0
      %1049 = vmatpush1.bf16.msra.mxu0 %v1007
      %1050 = vmatprep.subr.bf16.mxu0 0
      %1051 = vmatpush1.bf16.msra.mxu0 %v1008
      %1052 = vmatprep.subr.bf16.mxu0 0
      %1053 = vmatpush1.bf16.msra.mxu0 %v1009
      %1054 = vmatprep.subr.bf16.mxu0 0
      %1055 = vmatpush1.bf16.msra.mxu0 %v1010
      %1056 = vmatprep.subr.bf16.mxu0 0
      %1057 = vmatpush1.bf16.msra.mxu0 %v1011
      %1058 = vmatprep.subr.bf16.mxu0 0
      %1059 = vmatpush1.bf16.msra.mxu0 %v1012
      %1060 = vmatprep.subr.bf16.mxu0 0
      %1061 = vmatpush1.bf16.msra.mxu0 %v1013
      %1062 = vmatprep.mubr.bf16.mxu0 %v931
      %1063 = vmatmul.mubr.bf16.gmra.mrb[0].mxu0 %v930
      %v1064 = vpop.f32.mrb[0].mxu0
      %v1065 = vadd.f32 %v925, %v1064
      %v1066 = vpop.f32.mrb[0].mxu0
      %v1067 = vpop.f32.mrb[0].mxu0
      %v1068 = vpop.f32.mrb[0].mxu0
      %1069 = vdwg.mxu0
      %1070 = vst [vmem:[%s176] sm:$0xff] %v1065
      %p1071 = scmp.lt.s32.totalorder %s22, 1
      %s1072 = scalar_select %p1071, %s22, 1
      %s1073 = smul.addr %s1072, 8
      %s1074 = scalar_lea.vmem %s5, %s1073
      // Predicated region
      $region33: #{patch_embedding.2} parent=31 // pred_check
        %p1075 = pneg %p108
      $region34: #{patch_embedding.2} parent=31 // pred_check_branch
        %1077 = sbr.rel (%p1075) target = $region36
      $region35: #{patch_embedding.2} parent=31 // pred_region
        _
      $region36: #{patch_embedding.2} parent=31 // pred_fallthru
        _
    $region32: #{patch_embedding.2} parent=5 // pred_fallthru
      _
    %p1078 = scmp.le.s32.totalorder 2, %s17
    // Predicated region
    $region37: #{patch_embedding.2} parent=5 // pred_check
      %p1079 = pneg %p1078
    $region38: #{patch_embedding.2} parent=5 // pred_check_branch
      %1081 = sbr.rel (%p1079) target = $region40
    $region39: #{patch_embedding.2} parent=5 // pred_region
      %s1082 = ssub.s32 %s17, 2
      // Predicated region
      $region41: #{patch_embedding.2} parent=39 // pred_check
        %p1083 = pneg %p114
      $region42: #{patch_embedding.2} parent=39 // pred_check_branch
        %1085 = sbr.rel (%p1083) target = $region44
      $region43: #{patch_embedding.2} parent=39 // pred_region
        %p1086 = scmp.lt.s32.totalorder %s23, 1
        %s1087 = scalar_select %p1086, %s23, 1
        %s1088 = smul.addr %s1087, 8
        %s1089 = scalar_lea.vmem %s5, %s1088
      $region44: #{patch_embedding.2} parent=39 // pred_fallthru
        _
    $region40: #{patch_embedding.2} parent=5 // pred_fallthru
      _
  $region6: #{patch_embedding.2} parent=0 // loop_footer
    %s21 = sadd.s32 1, %s17
  $region7: #{patch_embedding.2} parent=0 // loop_footer_branch
    %16 = sbr.rel target = $region3
  $region8: #{patch_embedding.2} parent=0 // loop_exit
    _

</llo_original>
